<compile_context>
chip_gen: v6e
topology: v6e:2x2x1
jax: 0.10.0
libtpu: 0.0.40
codegen_flags: <defaults>
</compile_context>

<pallas_src>
import functools

import jax
import jax.numpy as jnp
from jax.experimental import pallas as pl
from jax.experimental.pallas import tpu as pltpu


# ------------------------------ small helpers -------------------------------
def _round_up(x, m):
    return ((x + m - 1) // m) * m


def _pad2(x, rows, cols):
    return jnp.pad(x, ((0, rows - x.shape[0]), (0, cols - x.shape[1])))


def _bf16_eup_ok():
    """bf16 VPU/EUP exists on v6e/v7x; keep f32 tanh on v5e / unknown chips."""
    try:
        kind = jax.devices()[0].device_kind.lower()
    except Exception:
        return False
    return ("v6" in kind) or ("v7" in kind)


# ----------------------------- Pallas kernel --------------------------------
def friednet_kernel(K, tanh_bf16, y_ref, a_ref,
                    w1_ref, b1_ref, w2_ref, b2_ref,       # encoder params
                    v1_ref, c1_ref, v2_ref, c2_ref,       # decoder params
                    yrec_ref, tk_ref):
    y = y_ref[...]                                          # (TB, N_p)  bf16
    a = a_ref[...]                                          # (TB, K)    f32 (true K lanes)

    # -------- encoder: y_noisy -> t_k_hat  (bf16 MXU operands, f32 accum) ---
    h1 = jnp.maximum(
        jnp.dot(y, w1_ref[...], preferred_element_type=jnp.float32)
        + b1_ref[...], 0.0)                                 # (TB, H1_p) f32
    t_k = (jnp.dot(h1.astype(jnp.bfloat16), w2_ref[...],
                   preferred_element_type=jnp.float32)
           + b2_ref[...])                                   # (TB, K_p)  f32
    tk_ref[...] = t_k[:, :K].astype(tk_ref.dtype)           # only real K lanes hit HBM

    # -------- decoder + true-a_k reconstruction (collapsed K-loop) ----------
    # y_rec = sum_k a_k * (tanh(t_k * v1 + c1) @ v2 + c2)
    #       = (sum_k a_k * tanh(t_k * v1 + c1)) @ v2 + (sum_k a_k) * c2
    tb = y.shape[0]
    h2p = v1_ref.shape[1]
    v1b = jnp.broadcast_to(v1_ref[...], (tb, h2p))           # hoisted (no in-loop CSE)
    c1b = jnp.broadcast_to(c1_ref[...], (tb, h2p))

    def term(t_col, a_col):
        z = t_col * v1b + c1b
        if tanh_bf16:
            z = z.astype(jnp.bfloat16)                       # EUP bf16 tanh (v6e/v7x)
        return a_col * jnp.tanh(z)                           # f32 accumulation

    if K <= 8:
        # Small static unroll; g initialized with the k=0 term (no zeros + add).
        g = term(t_k[:, 0:1], a[:, 0:1])
        for k in range(1, K):
            g = g + term(t_k[:, k:k + 1], a[:, k:k + 1])
    else:
        # Larger K: visible loop bounds vreg live ranges for the scheduler.
        def body(k, acc):
            t_col = jax.lax.dynamic_slice_in_dim(t_k, k, 1, axis=1)
            a_col = jax.lax.dynamic_slice_in_dim(a, k, 1, axis=1)
            return acc + term(t_col, a_col)
        g = jax.lax.fori_loop(1, K, body,
                              term(t_k[:, 0:1], a[:, 0:1]), unroll=True)

    a_sum = jnp.sum(a, axis=1, keepdims=True)                # exact: no padded lanes
    y_rec = (jnp.dot(g.astype(jnp.bfloat16), v2_ref[...],
                     preferred_element_type=jnp.float32)     # single MXU matmul
             + a_sum * c2_ref[...])                          # (TB, N_p) f32
    yrec_ref[...] = y_rec.astype(yrec_ref.dtype)             # bf16 writeback


# ------------------------------ JAX wrapper ---------------------------------
def friednet_forward(y_noisy, a_k_init, t_k_init, params):
    """Returns (y_recon, t_k_hat), mirroring FRIEDNet.forward.

    t_k_init is unused because an encoder is configured (as in the PyTorch
    module when prms['model_encoder'] is set)."""
    del t_k_init
    w1, b1, w2, b2, v1, c1, v2, c2 = params
    B, N = y_noisy.shape
    K = a_k_init.shape[1]
    H1 = w1.shape[1]
    H2 = v1.shape[1]

    f32, bf16 = jnp.float32, jnp.bfloat16
    LANE = 128
    SUB = 16          # sublane granule that also satisfies bf16 row packing
    TB_CAP = 1024     # ~85% HBM roofline per tiling sweep; far under VMEM limits

    # Feature axes that feed the MXU stay zero-padded to 128 lanes (exact
    # semantics: padded columns are zero / sliced off outside).
    N_p = _round_up(N, LANE)
    K_p = _round_up(K, LANE)      # encoder-output matmul width only
    H1_p = _round_up(H1, LANE)
    H2_p = _round_up(H2, LANE)

    # ---- batch tiling ----
    B_sub = _round_up(B, SUB)
    TB = min(B_sub, TB_CAP)
    # v7x megacore: keep >= 2 grid steps on the "parallel" batch axis whenever
    # the batch spans more than one minimal tile (otherwise one TC idles).
    if B_sub > SUB and B_sub <= TB:
        TB = _round_up((B_sub + 1) // 2, SUB)
    B_p = _round_up(B, TB)
    grid_b = B_p // TB

    # Pad / cast once at the pallas_call boundary (bf16 MXU operands, f32 biases).
    y_p = _pad2(y_noisy.astype(f32), B_p, N_p).astype(bf16)
    a_p = jnp.pad(a_k_init.astype(f32), ((0, B_p - B), (0, 0)))   # lane dim stays K
    w1_p = _pad2(w1, N_p, H1_p).astype(bf16)
    b1_p = _pad2(b1, 1, H1_p).astype(f32)
    w2_p = _pad2(w2, H1_p, K_p).astype(bf16)
    b2_p = _pad2(b2, 1, K_p).astype(f32)
    v1_p = _pad2(v1, 1, H2_p).astype(f32)
    c1_p = _pad2(c1, 1, H2_p).astype(f32)
    v2_p = _pad2(v2, H2_p, N_p).astype(bf16)
    c2_p = _pad2(c2, 1, N_p).astype(f32)

    def _row_spec(cols):
        return pl.BlockSpec((TB, cols), lambda i: (i, 0))

    def _const_spec(x):
        # Grid-invariant weights: single-buffered (double-buffering only doubles
        # weight VMEM + DMA descriptors).
        try:
            return pl.BlockSpec(x.shape, lambda i: (0, 0),
                                pipeline_mode=pl.Buffered(1))
        except TypeError:   # older jax without pipeline_mode support
            return pl.BlockSpec(x.shape, lambda i: (0, 0))

    in_specs = [
        _row_spec(N_p),                 # y_noisy  (bf16, lane-dense)
        _row_spec(K),                   # a_k_init (f32, unpadded K lanes)
        _const_spec(w1_p), _const_spec(b1_p),
        _const_spec(w2_p), _const_spec(b2_p),
        _const_spec(v1_p), _const_spec(c1_p),
        _const_spec(v2_p), _const_spec(c2_p),
    ]
    out_specs = (_row_spec(N_p),        # y_recon  (bf16, lane-dense: N_p % 128 == 0)
                 _row_spec(K))          # t_k_hat  (f32, true K lanes)
    out_shape = (jax.ShapeDtypeStruct((B_p, N_p), bf16),
                 jax.ShapeDtypeStruct((B_p, K), f32))

    # VMEM budget: double-buffered row streams + single-buffered weights +
    # live f32 intermediates, clamped to [32 MiB, 64 MiB] (v7x physical = 64 MiB).
    blk_bytes = (2 * TB * N_p * 2 + 2 * TB * K * 4          # y in, a in
                 + 2 * TB * N_p * 2 + 2 * TB * K * 4        # y_rec out, t_k out
                 + (N_p * H1_p + H1_p * K_p + H2_p * N_p) * 2
                 + (H1_p + K_p + 2 * H2_p + N_p) * 4)
    interm_bytes = 2 * TB * (H1_p + K_p + 2 * H2_p + N_p) * 4
    vmem_limit = int(min(64 * 2**20,
                         max(32 * 2**20, 1.5 * (blk_bytes + interm_bytes))))

    # Advisory cost estimate: lets XLA schedule the wrapper-side pads/casts/
    # slices around the custom call instead of serializing.
    weight_bytes = ((N_p * H1_p + H1_p * K_p + H2_p * N_p) * 2
                    + (H1_p + K_p + 2 * H2_p + N_p) * 4)
    stream_bytes = grid_b * TB * (N_p * 2 + K * 4 + N_p * 2 + K * 4)
    cost = pl.CostEstimate(
        flops=grid_b * (2 * TB * (N_p * H1_p + H1_p * K_p + H2_p * N_p)
                        + 3 * TB * K * H2_p),
        transcendentals=grid_b * TB * K * H2_p,
        bytes_accessed=weight_bytes + stream_bytes)

    kernel = functools.partial(friednet_kernel, K, _bf16_eup_ok())

    y_rec_p, t_k_p = pl.pallas_call(
        kernel,
        grid=(grid_b,),
        in_specs=in_specs,
        out_specs=out_specs,
        out_shape=out_shape,
        compiler_params=pltpu.CompilerParams(
            dimension_semantics=("parallel",),     # batch axis -> 2 TCs on v7x
            vmem_limit_bytes=vmem_limit),
        cost_estimate=cost,
    )(y_p, a_p, w1_p, b1_p, w2_p, b2_p, v1_p, c1_p, v2_p, c2_p)

    return y_rec_p[:B, :N].astype(f32), t_k_p[:B]


# --------------------------- pure-JAX reference ------------------------------
def friednet_reference(y_noisy, a_k_init, params):
    w1, b1, w2, b2, v1, c1, v2, c2 = params
    h1 = jnp.maximum(y_noisy @ w1 + b1, 0.0)
    t_k = h1 @ w2 + b2                                      # (B, K)
    B, K = t_k.shape
    t_flat = t_k.reshape(B * K, 1)
    h2 = jnp.tanh(t_flat @ v1 + c1)
    phi_t = (h2 @ v2 + c2).reshape(B, K, -1)                # (B, K, N)
    phi = jnp.swapaxes(phi_t, 1, 2)                         # (B, N, K) == phi_hat
    a_hat = a_k_init[..., None]                             # unsqueeze(-1)
    y_rec = jnp.matmul(phi, a_hat)[..., 0]                  # squeeze(-1)
    return y_rec, t_k


# --------------------------------- main --------------------------------------
if __name__ == "__main__":
    B, N, K, H1, H2 = 2, 16, 4, 32, 32

    key = jax.random.PRNGKey(0)
    keys = jax.random.split(key, 11)

    # Deterministic synthetic parameters (shapes per the chosen FC encoder/decoder).
    w1 = 0.1 * jax.random.normal(keys[0], (N, H1), jnp.float32)
    b1 = 0.1 * jax.random.normal(keys[1], (1, H1), jnp.float32)
    w2 = 0.1 * jax.random.normal(keys[2], (H1, K), jnp.float32)
    b2 = 0.1 * jax.random.normal(keys[3], (1, K), jnp.float32)
    v1 = 0.5 * jax.random.normal(keys[4], (1, H2), jnp.float32)
    c1 = 0.1 * jax.random.normal(keys[5], (1, H2), jnp.float32)
    v2 = 0.1 * jax.random.normal(keys[6], (H2, N), jnp.float32)
    c2 = 0.1 * jax.random.normal(keys[7], (1, N), jnp.float32)
    params = (w1, b1, w2, b2, v1, c1, v2, c2)

    # Inputs, mirroring forward(y_noisy, a_k_init, t_k_init).
    y_noisy = jax.random.normal(keys[8], (B, N), jnp.float32)
    a_k_init = jax.random.normal(keys[9], (B, K), jnp.float32)
    t_k_init = 0.5 * jax.random.uniform(keys[10], (B, K), jnp.float32) - 0.25

    y_recon, t_k_hat = friednet_forward(y_noisy, a_k_init, t_k_init, params)
    jax.block_until_ready((y_recon, t_k_hat))

    # Numerical check against the pure-f32 JAX reference.  The kernel uses bf16
    # MXU operands / bf16 y_recon writeback with f32 accumulation, so tolerance
    # is loosened accordingly.
    y_ref, t_ref = friednet_reference(y_noisy, a_k_init, params)
    assert y_recon.shape == y_ref.shape and t_k_hat.shape == t_ref.shape
    assert jnp.allclose(t_k_hat, t_ref, atol=2e-2, rtol=2e-2)
    assert jnp.allclose(y_recon, y_ref, atol=2e-2, rtol=2e-2)

    print("KERNEL_OK")
</pallas_src>

<mosaic_0001>
module attributes {stable_mosaic.version = 11 : i64} {
  func.func @friednet_kernel(%arg0: i32, %arg1: memref<16x128xbf16, #tpu.memory_space<vmem>>, %arg2: memref<16x4xf32, #tpu.memory_space<vmem>>, %arg3: memref<128x128xbf16, #tpu.memory_space<vmem>>, %arg4: memref<1x128xf32, #tpu.memory_space<vmem>>, %arg5: memref<128x128xbf16, #tpu.memory_space<vmem>>, %arg6: memref<1x128xf32, #tpu.memory_space<vmem>>, %arg7: memref<1x128xf32, #tpu.memory_space<vmem>>, %arg8: memref<1x128xf32, #tpu.memory_space<vmem>>, %arg9: memref<128x128xbf16, #tpu.memory_space<vmem>>, %arg10: memref<1x128xf32, #tpu.memory_space<vmem>>, %arg11: memref<16x128xbf16, #tpu.memory_space<vmem>>, %arg12: memref<16x4xf32, #tpu.memory_space<vmem>>) attributes {dimension_semantics = [#tpu.dimension_semantics<parallel>], iteration_bounds = array<i64: 1>, scalar_prefetch = 0 : i64, scratch_operands = 0 : i64, tpu.core_type = #tpu.core_type<tc>, window_params = [{transform_indices = @transform_0, window_bounds = array<i64: 16, 128>}, {transform_indices = @transform_1, window_bounds = array<i64: 16, 4>}, {pipeline_mode = #tpu.pipeline_mode<synchronous>, transform_indices = @transform_2, window_bounds = array<i64: 128, 128>}, {pipeline_mode = #tpu.pipeline_mode<synchronous>, transform_indices = @transform_3, window_bounds = array<i64: 1, 128>}, {pipeline_mode = #tpu.pipeline_mode<synchronous>, transform_indices = @transform_4, window_bounds = array<i64: 128, 128>}, {pipeline_mode = #tpu.pipeline_mode<synchronous>, transform_indices = @transform_5, window_bounds = array<i64: 1, 128>}, {pipeline_mode = #tpu.pipeline_mode<synchronous>, transform_indices = @transform_6, window_bounds = array<i64: 1, 128>}, {pipeline_mode = #tpu.pipeline_mode<synchronous>, transform_indices = @transform_7, window_bounds = array<i64: 1, 128>}, {pipeline_mode = #tpu.pipeline_mode<synchronous>, transform_indices = @transform_8, window_bounds = array<i64: 128, 128>}, {pipeline_mode = #tpu.pipeline_mode<synchronous>, transform_indices = @transform_9, window_bounds = array<i64: 1, 128>}, {transform_indices = @transform_10, window_bounds = array<i64: 16, 128>}, {transform_indices = @transform_11, window_bounds = array<i64: 16, 4>}]} {
    %c0 = arith.constant 0 : index
    %c0_0 = arith.constant 0 : index
    %0 = vector.load %arg1[%c0, %c0_0] : memref<16x128xbf16, #tpu.memory_space<vmem>>, vector<16x128xbf16>
    %c0_1 = arith.constant 0 : index
    %c0_2 = arith.constant 0 : index
    %1 = vector.load %arg2[%c0_1, %c0_2] : memref<16x4xf32, #tpu.memory_space<vmem>>, vector<16x4xf32>
    %c0_3 = arith.constant 0 : index
    %c0_4 = arith.constant 0 : index
    %2 = vector.load %arg3[%c0_3, %c0_4] : memref<128x128xbf16, #tpu.memory_space<vmem>>, vector<128x128xbf16>
    %cst = arith.constant dense<0.000000e+00> : vector<16x128xf32>
    %3 = tpu.matmul %0, %2, %cst {dimension_numbers = #tpu.dot_dimension_numbers<[1], [0], [0], [1], [0, 0, 1, 1], [], []>} : vector<16x128xbf16>, vector<128x128xbf16>, vector<16x128xf32> -> vector<16x128xf32>
    %c0_5 = arith.constant 0 : index
    %c0_6 = arith.constant 0 : index
    %4 = vector.load %arg4[%c0_5, %c0_6] : memref<1x128xf32, #tpu.memory_space<vmem>>, vector<1x128xf32>
    %5 = vector.broadcast %4 : vector<1x128xf32> to vector<16x128xf32>
    %6 = arith.addf %3, %5 : vector<16x128xf32>
    %cst_7 = arith.constant 0.000000e+00 : f32
    %7 = vector.broadcast %cst_7 : f32 to vector<16x128xf32>
    %8 = arith.maximumf %6, %7 : vector<16x128xf32>
    %9 = arith.truncf %8 : vector<16x128xf32> to vector<16x128xbf16>
    %c0_8 = arith.constant 0 : index
    %c0_9 = arith.constant 0 : index
    %10 = vector.load %arg5[%c0_8, %c0_9] : memref<128x128xbf16, #tpu.memory_space<vmem>>, vector<128x128xbf16>
    %cst_10 = arith.constant dense<0.000000e+00> : vector<16x128xf32>
    %11 = tpu.matmul %9, %10, %cst_10 {dimension_numbers = #tpu.dot_dimension_numbers<[1], [0], [0], [1], [0, 0, 1, 1], [], []>} : vector<16x128xbf16>, vector<128x128xbf16>, vector<16x128xf32> -> vector<16x128xf32>
    %c0_11 = arith.constant 0 : index
    %c0_12 = arith.constant 0 : index
    %12 = vector.load %arg6[%c0_11, %c0_12] : memref<1x128xf32, #tpu.memory_space<vmem>>, vector<1x128xf32>
    %13 = vector.broadcast %12 : vector<1x128xf32> to vector<16x128xf32>
    %14 = arith.addf %11, %13 : vector<16x128xf32>
    %15 = vector.extract_strided_slice %14 {offsets = [0, 0], sizes = [16, 4], strides = [1, 1]} : vector<16x128xf32> to vector<16x4xf32>
    %c0_13 = arith.constant 0 : index
    %c0_14 = arith.constant 0 : index
    %16 = vector.load %arg12[%c0_13, %c0_14] : memref<16x4xf32, #tpu.memory_space<vmem>>, vector<16x4xf32>
    tpu.vector_store %arg12[%c0_13, %c0_14], %15 {strides = array<i32>} : memref<16x4xf32, #tpu.memory_space<vmem>>, vector<16x4xf32>,
    %c0_15 = arith.constant 0 : index
    %c0_16 = arith.constant 0 : index
    %17 = vector.load %arg7[%c0_15, %c0_16] : memref<1x128xf32, #tpu.memory_space<vmem>>, vector<1x128xf32>
    %18 = vector.shape_cast %17 : vector<1x128xf32> to vector<1x128xf32>
    %19 = vector.broadcast %18 : vector<1x128xf32> to vector<16x128xf32>
    %c0_17 = arith.constant 0 : index
    %c0_18 = arith.constant 0 : index
    %20 = vector.load %arg8[%c0_17, %c0_18] : memref<1x128xf32, #tpu.memory_space<vmem>>, vector<1x128xf32>
    %21 = vector.shape_cast %20 : vector<1x128xf32> to vector<1x128xf32>
    %22 = vector.broadcast %21 : vector<1x128xf32> to vector<16x128xf32>
    %23 = vector.extract_strided_slice %14 {offsets = [0, 0], sizes = [16, 1], strides = [1, 1]} : vector<16x128xf32> to vector<16x1xf32>
    %24 = vector.extract_strided_slice %1 {offsets = [0, 0], sizes = [16, 1], strides = [1, 1]} : vector<16x4xf32> to vector<16x1xf32>
    %25 = vector.broadcast %23 : vector<16x1xf32> to vector<16x128xf32>
    %26 = arith.mulf %25, %19 : vector<16x128xf32>
    %27 = arith.addf %26, %22 : vector<16x128xf32>
    %28 = math.tanh %27 : vector<16x128xf32>
    %29 = vector.broadcast %24 : vector<16x1xf32> to vector<16x128xf32>
    %30 = arith.mulf %29, %28 : vector<16x128xf32>
    %31 = vector.extract_strided_slice %14 {offsets = [0, 1], sizes = [16, 1], strides = [1, 1]} : vector<16x128xf32> to vector<16x1xf32>
    %32 = vector.extract_strided_slice %1 {offsets = [0, 1], sizes = [16, 1], strides = [1, 1]} : vector<16x4xf32> to vector<16x1xf32>
    %33 = vector.broadcast %31 : vector<16x1xf32> to vector<16x128xf32>
    %34 = arith.mulf %33, %19 : vector<16x128xf32>
    %35 = arith.addf %34, %22 : vector<16x128xf32>
    %36 = math.tanh %35 : vector<16x128xf32>
    %37 = vector.broadcast %32 : vector<16x1xf32> to vector<16x128xf32>
    %38 = arith.mulf %37, %36 : vector<16x128xf32>
    %39 = arith.addf %30, %38 : vector<16x128xf32>
    %40 = vector.extract_strided_slice %14 {offsets = [0, 2], sizes = [16, 1], strides = [1, 1]} : vector<16x128xf32> to vector<16x1xf32>
    %41 = vector.extract_strided_slice %1 {offsets = [0, 2], sizes = [16, 1], strides = [1, 1]} : vector<16x4xf32> to vector<16x1xf32>
    %42 = vector.broadcast %40 : vector<16x1xf32> to vector<16x128xf32>
    %43 = arith.mulf %42, %19 : vector<16x128xf32>
    %44 = arith.addf %43, %22 : vector<16x128xf32>
    %45 = math.tanh %44 : vector<16x128xf32>
    %46 = vector.broadcast %41 : vector<16x1xf32> to vector<16x128xf32>
    %47 = arith.mulf %46, %45 : vector<16x128xf32>
    %48 = arith.addf %39, %47 : vector<16x128xf32>
    %49 = vector.extract_strided_slice %14 {offsets = [0, 3], sizes = [16, 1], strides = [1, 1]} : vector<16x128xf32> to vector<16x1xf32>
    %50 = vector.extract_strided_slice %1 {offsets = [0, 3], sizes = [16, 1], strides = [1, 1]} : vector<16x4xf32> to vector<16x1xf32>
    %51 = vector.broadcast %49 : vector<16x1xf32> to vector<16x128xf32>
    %52 = arith.mulf %51, %19 : vector<16x128xf32>
    %53 = arith.addf %52, %22 : vector<16x128xf32>
    %54 = math.tanh %53 : vector<16x128xf32>
    %55 = vector.broadcast %50 : vector<16x1xf32> to vector<16x128xf32>
    %56 = arith.mulf %55, %54 : vector<16x128xf32>
    %57 = arith.addf %48, %56 : vector<16x128xf32>
    %cst_19 = arith.constant dense<0.000000e+00> : vector<16xf32>
    %58 = vector.multi_reduction <add>, %1, %cst_19 [1] : vector<16x4xf32> to vector<16xf32>
    %59 = vector.shape_cast %58 : vector<16xf32> to vector<16x1xf32>
    %60 = arith.truncf %57 : vector<16x128xf32> to vector<16x128xbf16>
    %c0_20 = arith.constant 0 : index
    %c0_21 = arith.constant 0 : index
    %61 = vector.load %arg9[%c0_20, %c0_21] : memref<128x128xbf16, #tpu.memory_space<vmem>>, vector<128x128xbf16>
    %cst_22 = arith.constant dense<0.000000e+00> : vector<16x128xf32>
    %62 = tpu.matmul %60, %61, %cst_22 {dimension_numbers = #tpu.dot_dimension_numbers<[1], [0], [0], [1], [0, 0, 1, 1], [], []>} : vector<16x128xbf16>, vector<128x128xbf16>, vector<16x128xf32> -> vector<16x128xf32>
    %c0_23 = arith.constant 0 : index
    %c0_24 = arith.constant 0 : index
    %63 = vector.load %arg10[%c0_23, %c0_24] : memref<1x128xf32, #tpu.memory_space<vmem>>, vector<1x128xf32>
    %64 = vector.broadcast %59 : vector<16x1xf32> to vector<16x128xf32>
    %65 = vector.broadcast %63 : vector<1x128xf32> to vector<16x128xf32>
    %66 = arith.mulf %64, %65 : vector<16x128xf32>
    %67 = arith.addf %62, %66 : vector<16x128xf32>
    %68 = arith.truncf %67 : vector<16x128xf32> to vector<16x128xbf16>
    %c0_25 = arith.constant 0 : index
    %c0_26 = arith.constant 0 : index
    %69 = vector.load %arg11[%c0_25, %c0_26] : memref<16x128xbf16, #tpu.memory_space<vmem>>, vector<16x128xbf16>
    tpu.vector_store %arg11[%c0_25, %c0_26], %68 {strides = array<i32>} : memref<16x128xbf16, #tpu.memory_space<vmem>>, vector<16x128xbf16>,
    return
  }
  func.func @transform_0(%arg0: i32) -> (i32, i32) {
    %c0_i32 = arith.constant 0 : i32
    %c0_i32_0 = arith.constant 0 : i32
    return %arg0, %c0_i32 : i32, i32
  }
  func.func @transform_1(%arg0: i32) -> (i32, i32) {
    %c0_i32 = arith.constant 0 : i32
    %c0_i32_0 = arith.constant 0 : i32
    return %arg0, %c0_i32 : i32, i32
  }
  func.func @transform_2(%arg0: i32) -> (i32, i32) {
    %c0_i32 = arith.constant 0 : i32
    %c0_i32_0 = arith.constant 0 : i32
    %c0_i32_1 = arith.constant 0 : i32
    return %c0_i32, %c0_i32_0 : i32, i32
  }
  func.func @transform_3(%arg0: i32) -> (i32, i32) {
    %c0_i32 = arith.constant 0 : i32
    %c0_i32_0 = arith.constant 0 : i32
    %c0_i32_1 = arith.constant 0 : i32
    return %c0_i32, %c0_i32_0 : i32, i32
  }
  func.func @transform_4(%arg0: i32) -> (i32, i32) {
    %c0_i32 = arith.constant 0 : i32
    %c0_i32_0 = arith.constant 0 : i32
    %c0_i32_1 = arith.constant 0 : i32
    return %c0_i32, %c0_i32_0 : i32, i32
  }
  func.func @transform_5(%arg0: i32) -> (i32, i32) {
    %c0_i32 = arith.constant 0 : i32
    %c0_i32_0 = arith.constant 0 : i32
    %c0_i32_1 = arith.constant 0 : i32
    return %c0_i32, %c0_i32_0 : i32, i32
  }
  func.func @transform_6(%arg0: i32) -> (i32, i32) {
    %c0_i32 = arith.constant 0 : i32
    %c0_i32_0 = arith.constant 0 : i32
    %c0_i32_1 = arith.constant 0 : i32
    return %c0_i32, %c0_i32_0 : i32, i32
  }
  func.func @transform_7(%arg0: i32) -> (i32, i32) {
    %c0_i32 = arith.constant 0 : i32
    %c0_i32_0 = arith.constant 0 : i32
    %c0_i32_1 = arith.constant 0 : i32
    return %c0_i32, %c0_i32_0 : i32, i32
  }
  func.func @transform_8(%arg0: i32) -> (i32, i32) {
    %c0_i32 = arith.constant 0 : i32
    %c0_i32_0 = arith.constant 0 : i32
    %c0_i32_1 = arith.constant 0 : i32
    return %c0_i32, %c0_i32_0 : i32, i32
  }
  func.func @transform_9(%arg0: i32) -> (i32, i32) {
    %c0_i32 = arith.constant 0 : i32
    %c0_i32_0 = arith.constant 0 : i32
    %c0_i32_1 = arith.constant 0 : i32
    return %c0_i32, %c0_i32_0 : i32, i32
  }
  func.func @transform_10(%arg0: i32) -> (i32, i32) {
    %c0_i32 = arith.constant 0 : i32
    %c0_i32_0 = arith.constant 0 : i32
    return %arg0, %c0_i32 : i32, i32
  }
  func.func @transform_11(%arg0: i32) -> (i32, i32) {
    %c0_i32 = arith.constant 0 : i32
    %c0_i32_0 = arith.constant 0 : i32
    return %arg0, %c0_i32 : i32, i32
  }
}

</mosaic_0001>

<llo_original>
// kernel: tpu_custom_call.1
$region0: #{tpu_custom_call.1}
  #allocation0 [shape = 'u32[]', space=smem, size = 0x4, offset = 0x4, fixed_abs, tag = 'smem constant byte address 0x4 - core index']
  #allocation1 [shape = 'u32[144,128]{1,0:T(1,128)}', space=vmem, size = 0x12000, scoped, tag = 'internal scratch']
  %s0 = inlined_call_operand.vmem [shape: bf16[16,128], index: 0, kind: input, shape index: {}]
  %s1 = inlined_call_operand.vmem [shape: f32[16,4], index: 1, kind: input, shape index: {}]
  %s2 = inlined_call_operand.hbm [shape: bf16[128,128], index: 2, kind: input, shape index: {}]
  %s3 = inlined_call_operand.vmem [shape: f32[1,128], index: 3, kind: input, shape index: {}]
  %s4 = inlined_call_operand.hbm [shape: bf16[128,128], index: 4, kind: input, shape index: {}]
  %s5 = inlined_call_operand.vmem [shape: f32[1,128], index: 5, kind: input, shape index: {}]
  %s6 = inlined_call_operand.vmem [shape: f32[1,128], index: 6, kind: input, shape index: {}]
  %s7 = inlined_call_operand.vmem [shape: f32[1,128], index: 7, kind: input, shape index: {}]
  %s8 = inlined_call_operand.hbm [shape: bf16[128,128], index: 8, kind: input, shape index: {}]
  %s9 = inlined_call_operand.vmem [shape: f32[1,128], index: 9, kind: input, shape index: {}]
  %s10 = inlined_call_operand.hbm [shape: bf16[16,128], index: 10, kind: output, shape index: {0}]
  %s11 = inlined_call_operand.vmem [shape: f32[16,4], index: 11, kind: output, shape index: {1}]
  %12 = xla_tuple %s10, %s11
  %s13 = sld [smem:[#allocation0]]
  $region70: #{tpu_custom_call.1} parent=0
    _
  %s15 = ssub.s32 1, %s13
  %s16 = scalar_select 0, %s15, %s13
  $region1: #{tpu_custom_call.1} parent=0
    #allocation2 [shape = 'u8[32768]{0}', space=vmem, size = 0x8000, scoped, tag = 'input window, operand 2, single buffered']
    #allocation3 [shape = 's32[1]{0}', space=sflag, size = 0x4, scoped, tag = 'scoped memory for tpu_custom_call.1']
    #allocation4 [shape = 's32[1]{0}', space=sflag, size = 0x4, scoped, tag = 'scoped memory for tpu_custom_call.1']
    #allocation5 [shape = 'u8[32768]{0}', space=vmem, size = 0x8000, scoped, tag = 'input window, operand 4, single buffered']
    #allocation6 [shape = 's32[1]{0}', space=sflag, size = 0x4, scoped, tag = 'scoped memory for tpu_custom_call.1']
    #allocation7 [shape = 'u8[32768]{0}', space=vmem, size = 0x8000, scoped, tag = 'input window, operand 8, single buffered']
    #allocation8 [shape = 'u8[4096]{0}', space=vmem, size = 0x1000, scoped, tag = 'output window, operand 0, single buffered']
    %17 = vsyncpa [#allocation3], 0
    %18 = vsyncpa [#allocation6], 0
    %19 = vsyncpa [#allocation4], 0
    // Predicated region
    $region2: #{tpu_custom_call.1} parent=1 // pred_check
      _
    $region3: #{tpu_custom_call.1} parent=1 // pred_check_branch
      %21 = sbr.rel (0) target = $region5
    $region4: #{tpu_custom_call.1} parent=1 // pred_region
      _
    $region5: #{tpu_custom_call.1} parent=1 // pred_fallthru
      _
    // Predicated region
    $region6: #{tpu_custom_call.1} parent=1 // pred_check
      _
    $region7: #{tpu_custom_call.1} parent=1 // pred_check_branch
      %23 = sbr.rel (0) target = $region9
    $region8: #{tpu_custom_call.1} parent=1 // pred_region
      _
    $region9: #{tpu_custom_call.1} parent=1 // pred_fallthru
      _
    // Predicated region
    $region10: #{tpu_custom_call.1} parent=1 // pred_check
      _
    $region11: #{tpu_custom_call.1} parent=1 // pred_check_branch
      %25 = sbr.rel (0) target = $region13
    $region12: #{tpu_custom_call.1} parent=1 // pred_region
      %s27 = ssub.s32 1024, 1024
      %28 = vsyncadd [#allocation3], %s27
      %s29 = sshll.u32 [#allocation2], 4
      %s30 = int_to_ptr.vmem [resolvable:$true] %s29
      %35 = dma.hbm_to_vmem [thread:$0]  %s2, 1024, %s30, [#allocation3], 64, 64, 4
    $region13: #{tpu_custom_call.1} parent=1 // pred_fallthru
      _
    // Predicated region
    $region14: #{tpu_custom_call.1} parent=1 // pred_check
      _
    $region15: #{tpu_custom_call.1} parent=1 // pred_check_branch
      %37 = sbr.rel (0) target = $region17
    $region16: #{tpu_custom_call.1} parent=1 // pred_region
      _
    $region17: #{tpu_custom_call.1} parent=1 // pred_fallthru
      _
    // Predicated region
    $region18: #{tpu_custom_call.1} parent=1 // pred_check
      _
    $region19: #{tpu_custom_call.1} parent=1 // pred_check_branch
      %39 = sbr.rel (0) target = $region21
    $region20: #{tpu_custom_call.1} parent=1 // pred_region
      %s41 = ssub.s32 1024, 1024
      %42 = vsyncadd [#allocation6], %s41
      %s43 = sshll.u32 [#allocation5], 4
      %s44 = int_to_ptr.vmem [resolvable:$true] %s43
      %49 = dma.hbm_to_vmem [thread:$0]  %s4, 1024, %s44, [#allocation6], 64, 64, 4
    $region21: #{tpu_custom_call.1} parent=1 // pred_fallthru
      _
    // Predicated region
    $region22: #{tpu_custom_call.1} parent=1 // pred_check
      _
    $region23: #{tpu_custom_call.1} parent=1 // pred_check_branch
      %51 = sbr.rel (0) target = $region25
    $region24: #{tpu_custom_call.1} parent=1 // pred_region
      _
    $region25: #{tpu_custom_call.1} parent=1 // pred_fallthru
      _
    // Predicated region
    $region26: #{tpu_custom_call.1} parent=1 // pred_check
      _
    $region27: #{tpu_custom_call.1} parent=1 // pred_check_branch
      %53 = sbr.rel (0) target = $region29
    $region28: #{tpu_custom_call.1} parent=1 // pred_region
      _
    $region29: #{tpu_custom_call.1} parent=1 // pred_fallthru
      _
    // Predicated region
    $region30: #{tpu_custom_call.1} parent=1 // pred_check
      _
    $region31: #{tpu_custom_call.1} parent=1 // pred_check_branch
      %55 = sbr.rel (0) target = $region33
    $region32: #{tpu_custom_call.1} parent=1 // pred_region
      _
    $region33: #{tpu_custom_call.1} parent=1 // pred_fallthru
      _
    // Predicated region
    $region34: #{tpu_custom_call.1} parent=1 // pred_check
      _
    $region35: #{tpu_custom_call.1} parent=1 // pred_check_branch
      %57 = sbr.rel (0) target = $region37
    $region36: #{tpu_custom_call.1} parent=1 // pred_region
      %s59 = ssub.s32 1024, 1024
      %60 = vsyncadd [#allocation6], %s59
      %s61 = sshll.u32 [#allocation7], 4
      %s62 = int_to_ptr.vmem [resolvable:$true] %s61
      %67 = dma.hbm_to_vmem [thread:$0]  %s8, 1024, %s62, [#allocation6], 64, 64, 4
    $region37: #{tpu_custom_call.1} parent=1 // pred_fallthru
      _
    // Predicated region
    $region38: #{tpu_custom_call.1} parent=1 // pred_check
      _
    $region39: #{tpu_custom_call.1} parent=1 // pred_check_branch
      %69 = sbr.rel (0) target = $region41
    $region40: #{tpu_custom_call.1} parent=1 // pred_region
      _
    $region41: #{tpu_custom_call.1} parent=1 // pred_fallthru
      _
    // Predicated region
    $region42: #{tpu_custom_call.1} parent=1 // pred_check
      _
    $region43: #{tpu_custom_call.1} parent=1 // pred_check_branch
      %71 = sbr.rel (0) target = $region45
    $region44: #{tpu_custom_call.1} parent=1 // pred_region
      %72 = dma.done [#allocation3], 1024
    $region45: #{tpu_custom_call.1} parent=1 // pred_fallthru
      _
    // Predicated region
    $region46: #{tpu_custom_call.1} parent=1 // pred_check
      _
    $region47: #{tpu_custom_call.1} parent=1 // pred_check_branch
      %74 = sbr.rel (0) target = $region49
    $region48: #{tpu_custom_call.1} parent=1 // pred_region
      %75 = dma.done [#allocation6], 1024
    $region49: #{tpu_custom_call.1} parent=1 // pred_fallthru
      _
    // Predicated region
    $region50: #{tpu_custom_call.1} parent=1 // pred_check
      _
    $region51: #{tpu_custom_call.1} parent=1 // pred_check_branch
      %77 = sbr.rel (0) target = $region53
    $region52: #{tpu_custom_call.1} parent=1 // pred_region
      %78 = dma.done [#allocation6], 1024
    $region53: #{tpu_custom_call.1} parent=1 // pred_fallthru
      _
    %v80 = vld [vmem:[%s0] sm:$0xf]
    %v81 = vld [vmem:[%s0 + $0x4] sm:$0xf]
    %v82 = vld [vmem:[%s1] sm:$0xff]
    %v83 = vld [vmem:[%s1 + $0x8] sm:$0xff]
    %v84 = vld [vmem:[#allocation2] sm:$0xf]
    %v85 = vld [vmem:[#allocation2 + $0x4] sm:$0xf]
    %v86 = vld [vmem:[#allocation2 + $0x8] sm:$0xf]
    %v87 = vld [vmem:[#allocation2 + $0xc] sm:$0xf]
    %v88 = vld [vmem:[#allocation2 + $0x10] sm:$0xf]
    %v89 = vld [vmem:[#allocation2 + $0x14] sm:$0xf]
    %v90 = vld [vmem:[#allocation2 + $0x18] sm:$0xf]
    %v91 = vld [vmem:[#allocation2 + $0x1c] sm:$0xf]
    %v92 = vld [vmem:[#allocation2 + $0x20] sm:$0xf]
    %v93 = vld [vmem:[#allocation2 + $0x24] sm:$0xf]
    %v94 = vld [vmem:[#allocation2 + $0x28] sm:$0xf]
    %v95 = vld [vmem:[#allocation2 + $0x2c] sm:$0xf]
    %v96 = vld [vmem:[#allocation2 + $0x30] sm:$0xf]
    %v97 = vld [vmem:[#allocation2 + $0x34] sm:$0xf]
    %v98 = vld [vmem:[#allocation2 + $0x38] sm:$0xf]
    %v99 = vld [vmem:[#allocation2 + $0x3c] sm:$0xf]
    %v100 = vld [vmem:[%s3] sm:$0x1]
    %v102 = vlaneseq
    %v103 = vshrl.u32 %v102, 7
    %v104 = vsub.s32 0, %v103
    %v105 = vrot.slane %v100, %v104
    %v109 = vunpack.c.l.b16 %v80
    %v110 = vunpack.c.l.b16 %v81
    %v111 = vpack.c.b16 %v110, %v109
    %v129 = vunpack.c.l.b16 %v84
    %v130 = vunpack.c.l.b16 %v85
    %v131 = vunpack.c.l.b16 %v86
    %v132 = vunpack.c.l.b16 %v87
    %v133 = vunpack.c.l.b16 %v88
    %v134 = vunpack.c.l.b16 %v89
    %v135 = vunpack.c.l.b16 %v90
    %v136 = vunpack.c.l.b16 %v91
    %v137 = vunpack.c.l.b16 %v92
    %v138 = vunpack.c.l.b16 %v93
    %v139 = vunpack.c.l.b16 %v94
    %v140 = vunpack.c.l.b16 %v95
    %v141 = vunpack.c.l.b16 %v96
    %v142 = vunpack.c.l.b16 %v97
    %v143 = vunpack.c.l.b16 %v98
    %v144 = vunpack.c.l.b16 %v99
    %v145 = vpack.c.b16 %v130, %v129
    %v146 = vpack.c.b16 %v132, %v131
    %v147 = vpack.c.b16 %v134, %v133
    %v148 = vpack.c.b16 %v136, %v135
    %v149 = vpack.c.b16 %v138, %v137
    %v150 = vpack.c.b16 %v140, %v139
    %v151 = vpack.c.b16 %v142, %v141
    %v152 = vpack.c.b16 %v144, %v143
    %161 = vmatprep.subr.bf16.mxu0 0
    %162 = vmatpush1.bf16.msra.mxu0 %v152
    %163 = vmatprep.subr.bf16.mxu0 0
    %164 = vmatpush1.bf16.msra.mxu0 %v151
    %165 = vmatprep.subr.bf16.mxu0 0
    %166 = vmatpush1.bf16.msra.mxu0 %v150
    %167 = vmatprep.subr.bf16.mxu0 0
    %168 = vmatpush1.bf16.msra.mxu0 %v149
    %169 = vmatprep.subr.bf16.mxu0 0
    %170 = vmatpush1.bf16.msra.mxu0 %v148
    %171 = vmatprep.subr.bf16.mxu0 0
    %172 = vmatpush1.bf16.msra.mxu0 %v147
    %173 = vmatprep.subr.bf16.mxu0 0
    %174 = vmatpush1.bf16.msra.mxu0 %v146
    %175 = vmatprep.subr.bf16.mxu0 0
    %176 = vmatpush1.bf16.msra.mxu0 %v145
    %177 = vmatprep.subr.bf16.mxu0 0
    %178 = vmatpush2.bf16.msra.mxu0 0
    %179 = vmatprep.subr.bf16.mxu0 0
    %180 = vmatpush2.bf16.msra.mxu0 0
    %181 = vmatprep.subr.bf16.mxu0 0
    %182 = vmatpush2.bf16.msra.mxu0 0
    %183 = vmatprep.subr.bf16.mxu0 0
    %184 = vmatpush2.bf16.msra.mxu0 0
    %185 = vmatprep.subr.bf16.mxu0 0
    %186 = vmatpush2.bf16.msra.mxu0 0
    %187 = vmatprep.subr.bf16.mxu0 0
    %188 = vmatpush2.bf16.msra.mxu0 0
    %189 = vmatprep.subr.bf16.mxu0 0
    %190 = vmatpush2.bf16.msra.mxu0 0
    %191 = vmatprep.subr.bf16.mxu0 0
    %192 = vmatpush2.bf16.msra.mxu0 0
    %193 = vmatprep.mubr.bf16.mxu0 0
    %194 = vmatmul.mubr.bf16.gmra.mxu0 %v111
    %v195 = vpop.f32.mrf.mxu0
    %v196 = vadd.f32 %v105, %v195
    %v197 = vpop.f32.mrf.mxu0
    %v198 = vpop.f32.mrf.mxu0
    %v199 = vadd.f32 %v105, %v198
    %v200 = vpop.f32.mrf.mxu0
    %201 = vdwg.mxu0
    %v202 = vmax.f32 %v196, 0.0
    %v203 = vmax.f32 %v199, 0.0
    %v204 = vpack.c.bf16 %v203, %v202
    %v205 = vld [vmem:[#allocation5] sm:$0xf]
    %v206 = vld [vmem:[#allocation5 + $0x4] sm:$0xf]
    %v207 = vld [vmem:[#allocation5 + $0x8] sm:$0xf]
    %v208 = vld [vmem:[#allocation5 + $0xc] sm:$0xf]
    %v209 = vld [vmem:[#allocation5 + $0x10] sm:$0xf]
    %v210 = vld [vmem:[#allocation5 + $0x14] sm:$0xf]
    %v211 = vld [vmem:[#allocation5 + $0x18] sm:$0xf]
    %v212 = vld [vmem:[#allocation5 + $0x1c] sm:$0xf]
    %v213 = vld [vmem:[#allocation5 + $0x20] sm:$0xf]
    %v214 = vld [vmem:[#allocation5 + $0x24] sm:$0xf]
    %v215 = vld [vmem:[#allocation5 + $0x28] sm:$0xf]
    %v216 = vld [vmem:[#allocation5 + $0x2c] sm:$0xf]
    %v217 = vld [vmem:[#allocation5 + $0x30] sm:$0xf]
    %v218 = vld [vmem:[#allocation5 + $0x34] sm:$0xf]
    %v219 = vld [vmem:[#allocation5 + $0x38] sm:$0xf]
    %v220 = vld [vmem:[#allocation5 + $0x3c] sm:$0xf]
    %v221 = vld [vmem:[%s5] sm:$0x1]
    %v223 = vlaneseq
    %v224 = vshrl.u32 %v223, 7
    %v225 = vsub.s32 0, %v224
    %v226 = vrot.slane %v221, %v225
    %v244 = vunpack.c.l.b16 %v205
    %v245 = vunpack.c.l.b16 %v206
    %v246 = vunpack.c.l.b16 %v207
    %v247 = vunpack.c.l.b16 %v208
    %v248 = vunpack.c.l.b16 %v209
    %v249 = vunpack.c.l.b16 %v210
    %v250 = vunpack.c.l.b16 %v211
    %v251 = vunpack.c.l.b16 %v212
    %v252 = vunpack.c.l.b16 %v213
    %v253 = vunpack.c.l.b16 %v214
    %v254 = vunpack.c.l.b16 %v215
    %v255 = vunpack.c.l.b16 %v216
    %v256 = vunpack.c.l.b16 %v217
    %v257 = vunpack.c.l.b16 %v218
    %v258 = vunpack.c.l.b16 %v219
    %v259 = vunpack.c.l.b16 %v220
    %v260 = vpack.c.b16 %v245, %v244
    %v261 = vpack.c.b16 %v247, %v246
    %v262 = vpack.c.b16 %v249, %v248
    %v263 = vpack.c.b16 %v251, %v250
    %v264 = vpack.c.b16 %v253, %v252
    %v265 = vpack.c.b16 %v255, %v254
    %v266 = vpack.c.b16 %v257, %v256
    %v267 = vpack.c.b16 %v259, %v258
    %276 = vmatprep.subr.bf16.mxu0 0
    %277 = vmatpush1.bf16.msra.mxu0 %v267
    %278 = vmatprep.subr.bf16.mxu0 0
    %279 = vmatpush1.bf16.msra.mxu0 %v266
    %280 = vmatprep.subr.bf16.mxu0 0
    %281 = vmatpush1.bf16.msra.mxu0 %v265
    %282 = vmatprep.subr.bf16.mxu0 0
    %283 = vmatpush1.bf16.msra.mxu0 %v264
    %284 = vmatprep.subr.bf16.mxu0 0
    %285 = vmatpush1.bf16.msra.mxu0 %v263
    %286 = vmatprep.subr.bf16.mxu0 0
    %287 = vmatpush1.bf16.msra.mxu0 %v262
    %288 = vmatprep.subr.bf16.mxu0 0
    %289 = vmatpush1.bf16.msra.mxu0 %v261
    %290 = vmatprep.subr.bf16.mxu0 0
    %291 = vmatpush1.bf16.msra.mxu0 %v260
    %292 = vmatprep.subr.bf16.mxu0 0
    %293 = vmatpush2.bf16.msra.mxu0 0
    %294 = vmatprep.subr.bf16.mxu0 0
    %295 = vmatpush2.bf16.msra.mxu0 0
    %296 = vmatprep.subr.bf16.mxu0 0
    %297 = vmatpush2.bf16.msra.mxu0 0
    %298 = vmatprep.subr.bf16.mxu0 0
    %299 = vmatpush2.bf16.msra.mxu0 0
    %300 = vmatprep.subr.bf16.mxu0 0
    %301 = vmatpush2.bf16.msra.mxu0 0
    %302 = vmatprep.subr.bf16.mxu0 0
    %303 = vmatpush2.bf16.msra.mxu0 0
    %304 = vmatprep.subr.bf16.mxu0 0
    %305 = vmatpush2.bf16.msra.mxu0 0
    %306 = vmatprep.subr.bf16.mxu0 0
    %307 = vmatpush2.bf16.msra.mxu0 0
    %308 = vmatprep.mubr.bf16.mxu0 0
    %309 = vmatmul.mubr.bf16.gmra.mxu0 %v204
    %v310 = vpop.f32.mrf.mxu0
    %v311 = vadd.f32 %v226, %v310
    %v312 = vpop.f32.mrf.mxu0
    %v313 = vpop.f32.mrf.mxu0
    %v314 = vadd.f32 %v226, %v313
    %v315 = vpop.f32.mrf.mxu0
    %316 = vdwg.mxu0
    %vm317 = vcmask 31744
    %318 = vst.msk [vmem:[%s11] sm:$0xff] %vm317, %v311
    %319 = vst.msk [vmem:[%s11 + $0x8] sm:$0xff] %vm317, %v314
    %v320 = vld [vmem:[%s6] sm:$0x1]
    %v322 = vlaneseq
    %v323 = vshrl.u32 %v322, 7
    %v324 = vsub.s32 0, %v323
    %v325 = vrot.slane %v320, %v324
    %v327 = vld [vmem:[%s7] sm:$0x1]
    %v329 = vlaneseq
    %v330 = vshrl.u32 %v329, 7
    %v331 = vsub.s32 0, %v330
    %v332 = vrot.slane %v327, %v331
    %335 = vset.pattern.permute.xlu0 0
    %336 = vperm.xlu0 %335, %v311
    %v337 = vpop.permute.xlu0 %336
    %340 = vset.pattern.permute.xlu0 0
    %341 = vperm.xlu0 %340, %v314
    %v342 = vpop.permute.xlu0 %341
    %v344 = vmul.f32 %v337, %v325
    %v345 = vmul.f32 %v342, %v325
    %v346 = vadd.f32 %v344, %v332
    %v347 = vadd.f32 %v345, %v332
    %v348 = vtanh.pop %v346
    %v349 = vtanh.pop %v347
    %351 = vset.pattern.permute.xlu0 0
    %352 = vperm.xlu0 %351, %v82
    %v353 = vpop.permute.xlu0 %352
    %356 = vset.pattern.permute.xlu0 0
    %357 = vperm.xlu0 %356, %v83
    %v358 = vpop.permute.xlu0 %357
    %v360 = vmul.f32 %v353, %v348
    %v361 = vmul.f32 %v358, %v349
    %362 = vset.pattern.permute.xlu0 1
    %363 = vperm.xlu0 %362, %v311
    %v364 = vpop.permute.xlu0 %363
    %366 = vset.pattern.permute.xlu0 1
    %367 = vperm.xlu0 %366, %v314
    %v368 = vpop.permute.xlu0 %367
    %v370 = vmul.f32 %v364, %v325
    %v371 = vmul.f32 %v368, %v325
    %v372 = vadd.f32 %v370, %v332
    %v373 = vadd.f32 %v371, %v332
    %v374 = vtanh.pop %v372
    %v375 = vtanh.pop %v373
    %376 = vset.pattern.permute.xlu0 1
    %377 = vperm.xlu0 %376, %v82
    %v378 = vpop.permute.xlu0 %377
    %380 = vset.pattern.permute.xlu0 1
    %381 = vperm.xlu0 %380, %v83
    %v382 = vpop.permute.xlu0 %381
    %v384 = vmul.f32 %v378, %v374
    %v385 = vmul.f32 %v382, %v375
    %v386 = vadd.f32 %v360, %v384
    %v387 = vadd.f32 %v361, %v385
    %388 = vset.pattern.permute.xlu0 2
    %389 = vperm.xlu0 %388, %v311
    %v390 = vpop.permute.xlu0 %389
    %392 = vset.pattern.permute.xlu0 2
    %393 = vperm.xlu0 %392, %v314
    %v394 = vpop.permute.xlu0 %393
    %v396 = vmul.f32 %v390, %v325
    %v397 = vmul.f32 %v394, %v325
    %v398 = vadd.f32 %v396, %v332
    %v399 = vadd.f32 %v397, %v332
    %v400 = vtanh.pop %v398
    %v401 = vtanh.pop %v399
    %402 = vset.pattern.permute.xlu0 2
    %403 = vperm.xlu0 %402, %v82
    %v404 = vpop.permute.xlu0 %403
    %406 = vset.pattern.permute.xlu0 2
    %407 = vperm.xlu0 %406, %v83
    %v408 = vpop.permute.xlu0 %407
    %v410 = vmul.f32 %v404, %v400
    %v411 = vmul.f32 %v408, %v401
    %v412 = vadd.f32 %v386, %v410
    %v413 = vadd.f32 %v387, %v411
    %414 = vset.pattern.permute.xlu0 3
    %415 = vperm.xlu0 %414, %v311
    %v416 = vpop.permute.xlu0 %415
    %418 = vset.pattern.permute.xlu0 3
    %419 = vperm.xlu0 %418, %v314
    %v420 = vpop.permute.xlu0 %419
    %v422 = vmul.f32 %v416, %v325
    %v423 = vmul.f32 %v420, %v325
    %v424 = vadd.f32 %v422, %v332
    %v425 = vadd.f32 %v423, %v332
    %v426 = vtanh.pop %v424
    %v427 = vtanh.pop %v425
    %428 = vset.pattern.permute.xlu0 3
    %429 = vperm.xlu0 %428, %v82
    %v430 = vpop.permute.xlu0 %429
    %432 = vset.pattern.permute.xlu0 3
    %433 = vperm.xlu0 %432, %v83
    %v434 = vpop.permute.xlu0 %433
    %v436 = vmul.f32 %v430, %v426
    %v437 = vmul.f32 %v434, %v427
    %v438 = vadd.f32 %v412, %v436
    %v439 = vadd.f32 %v413, %v437
    %v440 = vsel %vm317, %v82, 0.0
    %441 = vadd.xlane.f32.xlu0 %v440
    %v442 = vpop.xlane.xlu0 %441
    %v443 = vsel %vm317, %v83, 0.0
    %444 = vadd.xlane.f32.xlu0 %v443
    %v445 = vpop.xlane.xlu0 %444
    %v446 = vpack.c.bf16 %v439, %v438
    %v447 = vld [vmem:[#allocation7] sm:$0xf]
    %v448 = vld [vmem:[#allocation7 + $0x4] sm:$0xf]
    %v449 = vld [vmem:[#allocation7 + $0x8] sm:$0xf]
    %v450 = vld [vmem:[#allocation7 + $0xc] sm:$0xf]
    %v451 = vld [vmem:[#allocation7 + $0x10] sm:$0xf]
    %v452 = vld [vmem:[#allocation7 + $0x14] sm:$0xf]
    %v453 = vld [vmem:[#allocation7 + $0x18] sm:$0xf]
    %v454 = vld [vmem:[#allocation7 + $0x1c] sm:$0xf]
    %v455 = vld [vmem:[#allocation7 + $0x20] sm:$0xf]
    %v456 = vld [vmem:[#allocation7 + $0x24] sm:$0xf]
    %v457 = vld [vmem:[#allocation7 + $0x28] sm:$0xf]
    %v458 = vld [vmem:[#allocation7 + $0x2c] sm:$0xf]
    %v459 = vld [vmem:[#allocation7 + $0x30] sm:$0xf]
    %v460 = vld [vmem:[#allocation7 + $0x34] sm:$0xf]
    %v461 = vld [vmem:[#allocation7 + $0x38] sm:$0xf]
    %v462 = vld [vmem:[#allocation7 + $0x3c] sm:$0xf]
    %v463 = vld [vmem:[%s9] sm:$0x1]
    %v465 = vlaneseq
    %v466 = vshrl.u32 %v465, 7
    %v467 = vsub.s32 0, %v466
    %v468 = vrot.slane %v463, %v467
    %v470 = vmul.f32 %v442, %v468
    %v471 = vmul.f32 %v445, %v468
    %v488 = vunpack.c.l.b16 %v447
    %v489 = vunpack.c.l.b16 %v448
    %v490 = vunpack.c.l.b16 %v449
    %v491 = vunpack.c.l.b16 %v450
    %v492 = vunpack.c.l.b16 %v451
    %v493 = vunpack.c.l.b16 %v452
    %v494 = vunpack.c.l.b16 %v453
    %v495 = vunpack.c.l.b16 %v454
    %v496 = vunpack.c.l.b16 %v455
    %v497 = vunpack.c.l.b16 %v456
    %v498 = vunpack.c.l.b16 %v457
    %v499 = vunpack.c.l.b16 %v458
    %v500 = vunpack.c.l.b16 %v459
    %v501 = vunpack.c.l.b16 %v460
    %v502 = vunpack.c.l.b16 %v461
    %v503 = vunpack.c.l.b16 %v462
    %v504 = vpack.c.b16 %v489, %v488
    %v505 = vpack.c.b16 %v491, %v490
    %v506 = vpack.c.b16 %v493, %v492
    %v507 = vpack.c.b16 %v495, %v494
    %v508 = vpack.c.b16 %v497, %v496
    %v509 = vpack.c.b16 %v499, %v498
    %v510 = vpack.c.b16 %v501, %v500
    %v511 = vpack.c.b16 %v503, %v502
    %520 = vmatprep.subr.bf16.mxu0 0
    %521 = vmatpush1.bf16.msra.mxu0 %v511
    %522 = vmatprep.subr.bf16.mxu0 0
    %523 = vmatpush1.bf16.msra.mxu0 %v510
    %524 = vmatprep.subr.bf16.mxu0 0
    %525 = vmatpush1.bf16.msra.mxu0 %v509
    %526 = vmatprep.subr.bf16.mxu0 0
    %527 = vmatpush1.bf16.msra.mxu0 %v508
    %528 = vmatprep.subr.bf16.mxu0 0
    %529 = vmatpush1.bf16.msra.mxu0 %v507
    %530 = vmatprep.subr.bf16.mxu0 0
    %531 = vmatpush1.bf16.msra.mxu0 %v506
    %532 = vmatprep.subr.bf16.mxu0 0
    %533 = vmatpush1.bf16.msra.mxu0 %v505
    %534 = vmatprep.subr.bf16.mxu0 0
    %535 = vmatpush1.bf16.msra.mxu0 %v504
    %536 = vmatprep.subr.bf16.mxu0 0
    %537 = vmatpush2.bf16.msra.mxu0 0
    %538 = vmatprep.subr.bf16.mxu0 0
    %539 = vmatpush2.bf16.msra.mxu0 0
    %540 = vmatprep.subr.bf16.mxu0 0
    %541 = vmatpush2.bf16.msra.mxu0 0
    %542 = vmatprep.subr.bf16.mxu0 0
    %543 = vmatpush2.bf16.msra.mxu0 0
    %544 = vmatprep.subr.bf16.mxu0 0
    %545 = vmatpush2.bf16.msra.mxu0 0
    %546 = vmatprep.subr.bf16.mxu0 0
    %547 = vmatpush2.bf16.msra.mxu0 0
    %548 = vmatprep.subr.bf16.mxu0 0
    %549 = vmatpush2.bf16.msra.mxu0 0
    %550 = vmatprep.subr.bf16.mxu0 0
    %551 = vmatpush2.bf16.msra.mxu0 0
    %552 = vmatprep.mubr.bf16.mxu0 0
    %553 = vmatmul.mubr.bf16.gmra.mxu0 %v446
    %v554 = vpop.f32.mrf.mxu0
    %v555 = vadd.f32 %v470, %v554
    %v556 = vpop.f32.mrf.mxu0
    %v557 = vpop.f32.mrf.mxu0
    %v558 = vadd.f32 %v471, %v557
    %v559 = vpop.f32.mrf.mxu0
    %560 = vdwg.mxu0
    %v561 = vpack.c.bf16 %v558, %v555
    %v563 = vunpack.c.l.b16 %v561
    %v564 = vunpack.c.h.b16 %v561
    %v565 = vpack.c.b16 %v563, %v563
    %v566 = vpack.c.b16 %v564, %v564
    %569 = vst [vmem:[#allocation8] sm:$0xf] %v565
    %570 = vst [vmem:[#allocation8 + $0x4] sm:$0xf] %v566
    // Predicated region
    $region54: #{tpu_custom_call.1} parent=1 // pred_check
      _
    $region55: #{tpu_custom_call.1} parent=1 // pred_check_branch
      %572 = sbr.rel (0) target = $region57
    $region56: #{tpu_custom_call.1} parent=1 // pred_region
      %s574 = ssub.s32 128, 128
      %575 = vsyncadd [#allocation4], %s574
      %s576 = sshll.u32 [#allocation8], 4
      %s577 = int_to_ptr.vmem [resolvable:$true] %s576
      %582 = dma.vmem_to_hbm [thread:$0]  %s577, 128, %s10, [#allocation4], 64, 64, 4
    $region57: #{tpu_custom_call.1} parent=1 // pred_fallthru
      _
    // Predicated region
    $region58: #{tpu_custom_call.1} parent=1 // pred_check
      _
    $region59: #{tpu_custom_call.1} parent=1 // pred_check_branch
      %584 = sbr.rel (0) target = $region61
    $region60: #{tpu_custom_call.1} parent=1 // pred_region
      _
    $region61: #{tpu_custom_call.1} parent=1 // pred_fallthru
      _
    // Predicated region
    $region62: #{tpu_custom_call.1} parent=1 // pred_check
      _
    $region63: #{tpu_custom_call.1} parent=1 // pred_check_branch
      %586 = sbr.rel (0) target = $region65
    $region64: #{tpu_custom_call.1} parent=1 // pred_region
      %587 = dma.done [#allocation4], 128
    $region65: #{tpu_custom_call.1} parent=1 // pred_fallthru
      _
    // Predicated region
    $region66: #{tpu_custom_call.1} parent=1 // pred_check
      _
    $region67: #{tpu_custom_call.1} parent=1 // pred_check_branch
      %589 = sbr.rel (0) target = $region69
    $region68: #{tpu_custom_call.1} parent=1 // pred_region
      _
    $region69: #{tpu_custom_call.1} parent=1 // pred_fallthru
      _
    %590 = vsyncpa [#allocation3], 1
    %591 = vsyncpa [#allocation6], 1
    %592 = vsyncpa [#allocation4], 1

</llo_original>
